<compile_context>
chip_gen: v5e
topology: v5e:2x2
jax: 0.10.0
libtpu: 0.0.40
codegen_flags: <defaults>
</compile_context>

<pallas_src>
import functools

import jax
import jax.numpy as jnp
from jax.experimental import pallas as pl
from jax.experimental.pallas import tpu as pltpu


def _mhsa_kernel(x_ref, w_ref, b_ref, o_ref, *, heads_per_group, head_dim, q_tile):
    # x_ref: (1, L, C)   bf16  -- one batch element
    # w_ref: (C, 3*G*D)  bf16  -- fused [Wq_g | Wk_g | Wv_g] for this head group
    # b_ref: (1, 3*G*D)  f32   -- fused [bq_g | bk_g | bv_g]
    # o_ref: (1, G, L, D) f32  -- this head group's rows of the [B, H, L, D] output
    G, D = heads_per_group, head_dim
    GD = G * D
    L = x_ref.shape[1]
    scale = D ** (-0.5)

    x = x_ref[0]                                                     # (L, C) bf16

    # Fused Q|K|V projection: one MXU pass (N = 3*G*D), bf16 in / f32 accumulate.
    qkv = jnp.dot(x, w_ref[...], preferred_element_type=jnp.float32) + b_ref[0]

    q_all = qkv[:, 0:GD] * scale          # fold 1/sqrt(D) into q once
    k = qkv[:, GD:2 * GD]
    v = qkv[:, 2 * GD:3 * GD]

    # Head-batched layout (G, L, D); permute in f32, cast to bf16 for the MXU.
    kh = jnp.transpose(k.reshape(L, G, D), (1, 0, 2)).astype(jnp.bfloat16)
    vh = jnp.transpose(v.reshape(L, G, D), (1, 0, 2)).astype(jnp.bfloat16)

    # Tile over query rows so the (G, Tq, L) score matrix stays bounded in VMEM.
    # TODO(synk): for very long L, also tile K/V with an online-softmax (flash) loop;
    # full-L K/V per head group is fine at DiT-scale sequence lengths.
    for start in range(0, L, q_tile):
        rows = min(q_tile, L - start)
        qh = jnp.transpose(q_all[start:start + rows].reshape(rows, G, D),
                           (1, 0, 2)).astype(jnp.bfloat16)           # (G, rows, D)

        # Scores: batched over heads, contraction on D (no explicit k.T).
        s = jnp.einsum('gqd,gkd->gqk', qh, kh,
                       preferred_element_type=jnp.float32)           # (G, rows, L) f32
        s = s - jnp.max(s, axis=-1, keepdims=True)
        p = jnp.exp(s)
        p = p * pl.reciprocal(jnp.sum(p, axis=-1, keepdims=True), approx=True)

        o = jnp.einsum('gqk,gkd->gqd', p.astype(jnp.bfloat16), vh,
                       preferred_element_type=jnp.float32)           # (G, rows, D) f32

        # Store directly in head-major [H, L, D] order: no per-tile transpose, and the
        # module's raw `.view(b, L, -1)` becomes a zero-cost host-side reshape.
        o_ref[0, :, start:start + rows, :] = o.astype(o_ref.dtype)


def _pick_heads_per_group(num_heads, head_dim, target_lanes=128):
    # Smallest divisor of num_heads whose group width G*D reaches ~128 lanes
    # (keeps the MXU N dimension wide without blowing up the score matrix).
    for g in range(1, num_heads + 1):
        if num_heads % g == 0 and g * head_dim >= target_lanes:
            return g
    return num_heads


def multi_head_self_attention(x, wq, bq, wk, bk, wv, bv, num_heads, *, q_tile=256):
    """x: [B, L, C]; w*: [C, C] (torch Linear weight, [out, in]); b*: [C]."""
    b, L, c = x.shape
    d = c // num_heads
    assert d * num_heads == c

    G = _pick_heads_per_group(num_heads, d)
    Hg = num_heads // G
    GD = G * d
    q_tile = min(q_tile, L)

    # Pack the three projection weights into a fused, head-grouped layout:
    #   columns [g*3*GD : (g+1)*3*GD] = [Wq_g | Wk_g | Wv_g]  (each (C, GD))
    def _group(w_t):
        return w_t.reshape(c, Hg, GD)

    w_grouped = jnp.stack([_group(wq.T), _group(wk.T), _group(wv.T)], axis=2)
    w_grouped = w_grouped.reshape(c, 3 * c).astype(jnp.bfloat16)          # (C, 3C)
    b_grouped = jnp.stack([bq.reshape(Hg, GD), bk.reshape(Hg, GD), bv.reshape(Hg, GD)],
                          axis=1).reshape(1, 3 * c).astype(jnp.float32)   # (1, 3C)

    kernel = functools.partial(_mhsa_kernel, heads_per_group=G, head_dim=d,
                               q_tile=q_tile)

    cost = pl.CostEstimate(
        flops=2 * b * L * c * 3 * c + 4 * b * num_heads * L * L * d,
        transcendentals=b * num_heads * L * L,
        bytes_accessed=2 * b * L * c + 2 * b * 3 * c * c + 4 * 3 * c + 4 * b * L * c,
    )

    out_hld = pl.pallas_call(
        kernel,
        grid=(b, Hg),
        in_specs=[
            pl.BlockSpec((1, L, c), lambda i, g: (i, 0, 0)),      # x, one batch element
            pl.BlockSpec((c, 3 * GD), lambda i, g: (0, g)),       # fused QKV weights, group g
            pl.BlockSpec((1, 3 * GD), lambda i, g: (0, g)),       # fused QKV bias, group g
        ],
        out_specs=pl.BlockSpec((1, G, L, d), lambda i, g: (i, g, 0, 0)),
        out_shape=jax.ShapeDtypeStruct((b, num_heads, L, d), jnp.float32),
        compiler_params=pltpu.CompilerParams(
            dimension_semantics=("parallel", "parallel")),
        cost_estimate=cost,
    )(x.astype(jnp.bfloat16), w_grouped, b_grouped)

    # The PyTorch module applies a raw `.view(b, L, -1)` to the *contiguous*
    # [B, H, L, D] attention output (no head un-permute). On a contiguous row-major
    # array that is just a metadata reshape -> free.
    return out_hld.reshape(b, L, c)


def _reference(x, wq, bq, wk, bk, wv, bv, num_heads):
    # Plain-JAX f32 replica of the PyTorch forward, for a correctness check.
    b, L, c = x.shape
    d = c // num_heads
    q = x @ wq.T + bq
    k = x @ wk.T + bk
    v = x @ wv.T + bv
    q = q.reshape(b, L, num_heads, d).transpose(0, 2, 1, 3)
    k = k.reshape(b, L, num_heads, d).transpose(0, 2, 1, 3)
    v = v.reshape(b, L, num_heads, d).transpose(0, 2, 1, 3)
    s = jnp.einsum("bhqd,bhkd->bhqk", q, k) * (d ** -0.5)
    p = jax.nn.softmax(s, axis=-1)
    o = jnp.einsum("bhqk,bhkd->bhqd", p, v)   # [B, H, L, D]
    return o.reshape(b, L, c)                 # raw reshape, matching torch .view


if __name__ == "__main__":
    # small shapes consistent with the module: embedding=32, 4 heads, seq=8, batch=2
    B, L, C, H = 2, 8, 32, 4

    key = jax.random.PRNGKey(0)
    kx, kwq, kbq, kwk, kbk, kwv, kbv = jax.random.split(key, 7)

    x = jax.random.normal(kx, (B, L, C), dtype=jnp.float32)
    wq = jax.random.normal(kwq, (C, C), dtype=jnp.float32) * 0.02
    bq = jax.random.normal(kbq, (C,), dtype=jnp.float32) * 0.02
    wk = jax.random.normal(kwk, (C, C), dtype=jnp.float32) * 0.02
    bk = jax.random.normal(kbk, (C,), dtype=jnp.float32) * 0.02
    wv = jax.random.normal(kwv, (C, C), dtype=jnp.float32) * 0.02
    bv = jax.random.normal(kbv, (C,), dtype=jnp.float32) * 0.02

    out = multi_head_self_attention(x, wq, bq, wk, bk, wv, bv, H)
    out = jax.block_until_ready(out)

    ref = _reference(x, wq, bq, wk, bk, wv, bv, H)
    assert out.shape == (B, L, C)
    # bf16 MXU inputs + approx reciprocal -> loosened tolerance vs the f32 reference.
    assert jnp.allclose(out, ref, atol=1e-2, rtol=1e-2), "mismatch vs reference"

    print("KERNEL_OK")
</pallas_src>

<mosaic_0001>
module attributes {stable_mosaic.version = 11 : i64} {
  func.func @_mhsa_kernel(%arg0: i32, %arg1: i32, %arg2: memref<1x8x32xbf16, #tpu.memory_space<vmem>>, %arg3: memref<32x96xbf16, #tpu.memory_space<vmem>>, %arg4: memref<1x96xf32, #tpu.memory_space<vmem>>, %arg5: memref<1x4x8x8xf32, #tpu.memory_space<vmem>>) attributes {dimension_semantics = [#tpu.dimension_semantics<parallel>, #tpu.dimension_semantics<parallel>], iteration_bounds = array<i64: 2, 1>, scalar_prefetch = 0 : i64, scratch_operands = 0 : i64, tpu.core_type = #tpu.core_type<tc>, window_params = [{transform_indices = @transform_0, window_bounds = array<i64: 1, 8, 32>}, {transform_indices = @transform_1, window_bounds = array<i64: 32, 96>}, {transform_indices = @transform_2, window_bounds = array<i64: 1, 96>}, {transform_indices = @transform_3, window_bounds = array<i64: 1, 4, 8, 8>}]} {
    %c0 = arith.constant 0 : index
    %c0_0 = arith.constant 0 : index
    %c0_1 = arith.constant 0 : index
    %0 = vector.load %arg2[%c0, %c0_0, %c0_1] : memref<1x8x32xbf16, #tpu.memory_space<vmem>>, vector<1x8x32xbf16>
    %1 = vector.shape_cast %0 : vector<1x8x32xbf16> to vector<8x32xbf16>
    %c0_2 = arith.constant 0 : index
    %c0_3 = arith.constant 0 : index
    %2 = vector.load %arg3[%c0_2, %c0_3] : memref<32x96xbf16, #tpu.memory_space<vmem>>, vector<32x96xbf16>
    %cst = arith.constant dense<0.000000e+00> : vector<8x96xf32>
    %3 = tpu.matmul %1, %2, %cst {dimension_numbers = #tpu.dot_dimension_numbers<[1], [0], [0], [1], [0, 0, 1, 1], [], []>} : vector<8x32xbf16>, vector<32x96xbf16>, vector<8x96xf32> -> vector<8x96xf32>
    %c0_4 = arith.constant 0 : index
    %c0_5 = arith.constant 0 : index
    %4 = vector.load %arg4[%c0_4, %c0_5] : memref<1x96xf32, #tpu.memory_space<vmem>>, vector<1x96xf32>
    %5 = vector.shape_cast %4 : vector<1x96xf32> to vector<96xf32>
    %6 = vector.shape_cast %5 : vector<96xf32> to vector<1x96xf32>
    %7 = vector.broadcast %6 : vector<1x96xf32> to vector<8x96xf32>
    %8 = arith.addf %3, %7 : vector<8x96xf32>
    %9 = vector.extract_strided_slice %8 {offsets = [0, 0], sizes = [8, 32], strides = [1, 1]} : vector<8x96xf32> to vector<8x32xf32>
    %cst_6 = arith.constant 0.353553385 : f32
    %10 = vector.broadcast %cst_6 : f32 to vector<8x32xf32>
    %11 = arith.mulf %9, %10 : vector<8x32xf32>
    %12 = vector.extract_strided_slice %8 {offsets = [0, 32], sizes = [8, 32], strides = [1, 1]} : vector<8x96xf32> to vector<8x32xf32>
    %13 = vector.extract_strided_slice %8 {offsets = [0, 64], sizes = [8, 32], strides = [1, 1]} : vector<8x96xf32> to vector<8x32xf32>
    %14 = vector.shape_cast %12 : vector<8x32xf32> to vector<8x4x8xf32>
    %15 = tpu.transpose %14, [1, 0, 2] : vector<8x4x8xf32> -> vector<4x8x8xf32>
    %16 = arith.truncf %15 : vector<4x8x8xf32> to vector<4x8x8xbf16>
    %17 = vector.shape_cast %13 : vector<8x32xf32> to vector<8x4x8xf32>
    %18 = tpu.transpose %17, [1, 0, 2] : vector<8x4x8xf32> -> vector<4x8x8xf32>
    %19 = arith.truncf %18 : vector<4x8x8xf32> to vector<4x8x8xbf16>
    %20 = vector.shape_cast %11 : vector<8x32xf32> to vector<8x4x8xf32>
    %21 = tpu.transpose %20, [1, 0, 2] : vector<8x4x8xf32> -> vector<4x8x8xf32>
    %22 = arith.truncf %21 : vector<4x8x8xf32> to vector<4x8x8xbf16>
    "tpu.trace_start"() <{level = 10 : i32, message = "gqd,gkd->gqk"}> : () -> ()
    %cst_7 = arith.constant dense<0.000000e+00> : vector<4x8x8xf32>
    %23 = tpu.matmul %22, %16, %cst_7 {dimension_numbers = #tpu.dot_dimension_numbers<[2], [2], [1], [1], [0, 0, 0, 1, 1, 1], [0], [0]>} : vector<4x8x8xbf16>, vector<4x8x8xbf16>, vector<4x8x8xf32> -> vector<4x8x8xf32>
    "tpu.trace_stop"() : () -> ()
    %cst_8 = arith.constant dense<0xFF800000> : vector<4x8xf32>
    %24 = vector.multi_reduction <maximumf>, %23, %cst_8 [2] : vector<4x8x8xf32> to vector<4x8xf32>
    %25 = vector.shape_cast %24 : vector<4x8xf32> to vector<4x8x1xf32>
    %26 = vector.broadcast %25 : vector<4x8x1xf32> to vector<4x8x8xf32>
    %27 = arith.subf %23, %26 : vector<4x8x8xf32>
    %28 = math.exp %27 : vector<4x8x8xf32>
    %cst_9 = arith.constant dense<0.000000e+00> : vector<4x8xf32>
    %29 = vector.multi_reduction <add>, %28, %cst_9 [2] : vector<4x8x8xf32> to vector<4x8xf32>
    %30 = vector.shape_cast %29 : vector<4x8xf32> to vector<4x8x1xf32>
    %31 = tpu.reciprocal %30 {approx = true} : vector<4x8x1xf32> -> vector<4x8x1xf32>
    %32 = vector.broadcast %31 : vector<4x8x1xf32> to vector<4x8x8xf32>
    %33 = arith.mulf %28, %32 : vector<4x8x8xf32>
    %34 = arith.truncf %33 : vector<4x8x8xf32> to vector<4x8x8xbf16>
    "tpu.trace_start"() <{level = 10 : i32, message = "gqk,gkd->gqd"}> : () -> ()
    %cst_10 = arith.constant dense<0.000000e+00> : vector<4x8x8xf32>
    %35 = tpu.matmul %34, %19, %cst_10 {dimension_numbers = #tpu.dot_dimension_numbers<[2], [1], [1], [2], [0, 0, 0, 1, 1, 2], [0], [0]>} : vector<4x8x8xbf16>, vector<4x8x8xbf16>, vector<4x8x8xf32> -> vector<4x8x8xf32>
    "tpu.trace_stop"() : () -> ()
    %c0_11 = arith.constant 0 : index
    %c0_12 = arith.constant 0 : index
    %c0_13 = arith.constant 0 : index
    %c0_14 = arith.constant 0 : index
    %36 = vector.load %arg5[%c0_11, %c0_12, %c0_13, %c0_14] : memref<1x4x8x8xf32, #tpu.memory_space<vmem>>, vector<1x4x8x8xf32>
    %37 = vector.shape_cast %36 : vector<1x4x8x8xf32> to vector<4x8x8xf32>
    %38 = vector.shape_cast %35 : vector<4x8x8xf32> to vector<1x4x8x8xf32>
    tpu.vector_store %arg5[%c0_11, %c0_12, %c0_13, %c0_14], %38 {strides = array<i32>} : memref<1x4x8x8xf32, #tpu.memory_space<vmem>>, vector<1x4x8x8xf32>,
    return
  }
  func.func @transform_0(%arg0: i32, %arg1: i32) -> (i32, i32, i32) {
    %c0_i32 = arith.constant 0 : i32
    %c0_i32_0 = arith.constant 0 : i32
    %c0_i32_1 = arith.constant 0 : i32
    return %arg0, %c0_i32, %c0_i32_0 : i32, i32, i32
  }
  func.func @transform_1(%arg0: i32, %arg1: i32) -> (i32, i32) {
    %c0_i32 = arith.constant 0 : i32
    %c0_i32_0 = arith.constant 0 : i32
    return %c0_i32, %arg1 : i32, i32
  }
  func.func @transform_2(%arg0: i32, %arg1: i32) -> (i32, i32) {
    %c0_i32 = arith.constant 0 : i32
    %c0_i32_0 = arith.constant 0 : i32
    return %c0_i32, %arg1 : i32, i32
  }
  func.func @transform_3(%arg0: i32, %arg1: i32) -> (i32, i32, i32, i32) {
    %c0_i32 = arith.constant 0 : i32
    %c0_i32_0 = arith.constant 0 : i32
    %c0_i32_1 = arith.constant 0 : i32
    return %arg0, %arg1, %c0_i32, %c0_i32_0 : i32, i32, i32, i32
  }
}

</mosaic_0001>

<llo_original>
// kernel: tpu_custom_call.1
$region0: #{tpu_custom_call.1}
  #allocation0 [shape = 'u32[]', space=smem, size = 0x4, offset = 0x4, fixed_abs, tag = 'smem constant byte address 0x4 - core index']
  #allocation1 [shape = 'u32[72,128]{1,0:T(1,128)}', space=vmem, size = 0x9000, scoped, tag = 'internal scratch']
  %s0 = inlined_call_operand.hbm [shape: bf16[2,8,32], index: 0, kind: input, shape index: {}]
  %s1 = inlined_call_operand.hbm [shape: bf16[32,96], index: 1, kind: input, shape index: {}]
  %s2 = inlined_call_operand.vmem [shape: f32[1,96], index: 2, kind: input, shape index: {}]
  %s3 = inlined_call_operand.hbm [shape: f32[2,4,8,8], index: 3, kind: output, shape index: {}]
  %s4 = sld [smem:[#allocation0]]
  $region53: #{tpu_custom_call.1} parent=0
    _
  %s6 = ssub.s32 1, %s4
  %s7 = scalar_select 0, %s6, %s4
  $region1: #{tpu_custom_call.1} parent=0
    #allocation2 [shape = 'u8[4096]{0}', space=vmem, size = 0x1000, scoped, tag = 'input window, operand 0']
    #allocation3 [shape = 's32[2]{0}', space=sflag, size = 0x8, scoped, tag = 'scoped memory for tpu_custom_call.1']
    #allocation4 [shape = 's32[2]{0}', space=sflag, size = 0x8, scoped, tag = 'scoped memory for tpu_custom_call.1']
    #allocation5 [shape = 'u8[8192]{0}', space=vmem, size = 0x2000, scoped, tag = 'input window, operand 1, single buffered']
    #allocation6 [shape = 's32[1]{0}', space=sflag, size = 0x4, scoped, tag = 'scoped memory for tpu_custom_call.1']
    #allocation7 [shape = 'u8[32768]{0}', space=vmem, size = 0x8000, scoped, tag = 'output window, operand 0']
    %8 = vsyncpa [#allocation3], 0
    %s9 = scalar_lea.sflag [#allocation3], 1
    %10 = vsyncpa %s9, 0
    %11 = vsyncpa [#allocation6], 0
    %12 = vsyncpa [#allocation4], 0
    %s13 = scalar_lea.sflag [#allocation4], 1
    %14 = vsyncpa %s13, 0
    loop: start=0, step=1, limit=4
    $region2: #{tpu_custom_call.1} parent=1 // loop_pre_header
      _
    $region3: #{tpu_custom_call.1} parent=1 // loop_header
      %s16 = sphi 0, %s20
      %p17 = scmp.ge.s32.totalorder %s16, 4
      %s23 = sphi 0, %s35
      %s24 = sphi 0, %s31
      %s25 = sphi 0, %s23
      %s26 = sphi 0, %s24
      %s27 = sphi 0, %s25
      %s28 = sphi 0, %s26
      %s38 = sphi 0, %s40
      %s41 = sphi 0, %s38
      %s42 = sphi 0, %s41
      %s58 = sphi 0, %s42
      %s64 = sphi 0, %s66
      %s67 = sphi 0, %s64
      %s68 = sphi 0, %s67
      %s84 = sphi 0, %s68
      %s90 = sphi 0, %s92
      %s93 = sphi 0, %s90
      %s94 = sphi 0, %s93
      %s110 = sphi 0, %s94
      %s118 = sphi 0, %s120
      %s121 = sphi 0, %s118
      %s122 = sphi 0, %s121
      %s138 = sphi 0, %s122
    $region4: #{tpu_custom_call.1} parent=1 // loop_header_branch
      %19 = sbr.rel (%p17) target = $region8
    $region5: #{tpu_custom_call.1} parent=1 // loop_body
      %s21 = ssub.s32 %s16, 1
      %s22 = ssub.s32 %s16, 2
      %s29 = sadd.s32 1, %s24
      %p30 = scmp.ge.s32.totalorder %s29, 1
      %s31 = scalar_select %p30, 0, %s29
      %s32 = sadd.s32 1, %s23
      %s33 = scalar_select %p30, %s32, %s23
      %p34 = scmp.ge.s32.totalorder %s33, 2
      %s35 = scalar_select %p34, 0, %s33
      %s36 = ssub.s32 %s23, %s35
      %p37 = scmp.eq.s32.totalorder %s36, 0
      %s39 = sadd.s32 %s38, 1
      %s40 = scalar_select %p37, %s38, %s39
      %p43 = pneg %p37
      %p44 = scmp.eq.s32.totalorder %s16, 1
      %p45 = por %p43, %p44
      %p46 = scmp.ne.s32.totalorder %s38, %s41
      %p47 = scmp.eq.s32.totalorder %s16, 0
      %p48 = por %p46, %p47
      %p49 = scmp.ne.s32.totalorder %s38, %s41
      %p50 = scmp.eq.s32.totalorder %s21, 1
      %p51 = por %p49, %p50
      %p52 = scmp.ne.s32.totalorder %s41, %s42
      %p53 = scmp.eq.s32.totalorder %s21, 0
      %p54 = por %p52, %p53
      %p55 = scmp.ne.s32.totalorder %s41, %s42
      %p56 = scmp.eq.s32.totalorder %s22, 1
      %p57 = por %p55, %p56
      %p59 = scmp.ne.s32.totalorder %s42, %s58
      %p60 = scmp.eq.s32.totalorder %s22, 0
      %p61 = por %p59, %p60
      %s62 = ssub.s32 %s24, %s31
      %p63 = scmp.eq.s32.totalorder %s62, 0
      %s65 = sadd.s32 %s64, 1
      %s66 = scalar_select %p63, %s64, %s65
      %p69 = pneg %p63
      %p70 = scmp.eq.s32.totalorder %s16, 1
      %p71 = por %p69, %p70
      %p72 = scmp.ne.s32.totalorder %s64, %s67
      %p73 = scmp.eq.s32.totalorder %s16, 0
      %p74 = por %p72, %p73
      %p75 = scmp.ne.s32.totalorder %s64, %s67
      %p76 = scmp.eq.s32.totalorder %s21, 1
      %p77 = por %p75, %p76
      %p78 = scmp.ne.s32.totalorder %s67, %s68
      %p79 = scmp.eq.s32.totalorder %s21, 0
      %p80 = por %p78, %p79
      %p81 = scmp.ne.s32.totalorder %s67, %s68
      %p82 = scmp.eq.s32.totalorder %s22, 1
      %p83 = por %p81, %p82
      %p85 = scmp.ne.s32.totalorder %s68, %s84
      %p86 = scmp.eq.s32.totalorder %s22, 0
      %p87 = por %p85, %p86
      %s88 = ssub.s32 %s24, %s31
      %p89 = scmp.eq.s32.totalorder %s88, 0
      %s91 = sadd.s32 %s90, 1
      %s92 = scalar_select %p89, %s90, %s91
      %p95 = pneg %p89
      %p96 = scmp.eq.s32.totalorder %s16, 1
      %p97 = por %p95, %p96
      %p98 = scmp.ne.s32.totalorder %s90, %s93
      %p99 = scmp.eq.s32.totalorder %s16, 0
      %p100 = por %p98, %p99
      %p101 = scmp.ne.s32.totalorder %s90, %s93
      %p102 = scmp.eq.s32.totalorder %s21, 1
      %p103 = por %p101, %p102
      %p104 = scmp.ne.s32.totalorder %s93, %s94
      %p105 = scmp.eq.s32.totalorder %s21, 0
      %p106 = por %p104, %p105
      %p107 = scmp.ne.s32.totalorder %s93, %s94
      %p108 = scmp.eq.s32.totalorder %s22, 1
      %p109 = por %p107, %p108
      %p111 = scmp.ne.s32.totalorder %s94, %s110
      %p112 = scmp.eq.s32.totalorder %s22, 0
      %p113 = por %p111, %p112
      %s114 = ssub.s32 %s23, %s35
      %s115 = ssub.s32 %s24, %s31
      %s116 = sor.u32 %s114, %s115
      %p117 = scmp.eq.s32.totalorder %s116, 0
      %s119 = sadd.s32 %s118, 1
      %s120 = scalar_select %p117, %s118, %s119
      %p123 = pneg %p117
      %p124 = scmp.eq.s32.totalorder %s16, 1
      %p125 = por %p123, %p124
      %p126 = scmp.ne.s32.totalorder %s118, %s121
      %p127 = scmp.eq.s32.totalorder %s16, 0
      %p128 = por %p126, %p127
      %p129 = scmp.ne.s32.totalorder %s118, %s121
      %p130 = scmp.eq.s32.totalorder %s21, 1
      %p131 = por %p129, %p130
      %p132 = scmp.ne.s32.totalorder %s121, %s122
      %p133 = scmp.eq.s32.totalorder %s21, 0
      %p134 = por %p132, %p133
      %p135 = scmp.ne.s32.totalorder %s121, %s122
      %p136 = scmp.eq.s32.totalorder %s22, 1
      %p137 = por %p135, %p136
      %p139 = scmp.ne.s32.totalorder %s122, %s138
      %p140 = scmp.eq.s32.totalorder %s22, 0
      %p141 = por %p139, %p140
      %p142 = scmp.le.s32.totalorder 1, %s16
      %p143 = scmp.lt.s32.totalorder %s16, 3
      %p144 = pnand %p142, %p143
      %p145 = pneg %p144
      // Predicated region
      $region9: #{tpu_custom_call.1} parent=5 // pred_check
        _
      $region10: #{tpu_custom_call.1} parent=5 // pred_check_branch
        %147 = sbr.rel (%p144) target = $region12
      $region11: #{tpu_custom_call.1} parent=5 // pred_region
        %s148 = ssub.s32 %s16, 1
        // Predicated region
        $region13: #{tpu_custom_call.1} parent=11 // pred_check
          %p149 = pneg %p80
        $region14: #{tpu_custom_call.1} parent=11 // pred_check_branch
          %151 = sbr.rel (%p149) target = $region16
        $region15: #{tpu_custom_call.1} parent=11 // pred_region
          %153 = vsyncadd [#allocation6], 0
          %s154 = smul.addr %s26, 4
          %s155 = scalar_lea.hbm %s1, %s154
          %s156 = sshll.u32 %s155, 4
          %s157 = int_to_ptr.hbm [resolvable:$true] %s156
          %s158 = sshll.u32 [#allocation5], 4
          %s159 = int_to_ptr.vmem [resolvable:$true] %s158
          %164 = dma.hbm_to_vmem [thread:$0]  %s157, 256, %s159, [#allocation6], 64, 64, 4
        $region16: #{tpu_custom_call.1} parent=11 // pred_fallthru
          _
        // Predicated region
        $region17: #{tpu_custom_call.1} parent=11 // pred_check
          %p165 = pneg %p106
        $region18: #{tpu_custom_call.1} parent=11 // pred_check_branch
          %167 = sbr.rel (%p165) target = $region20
        $region19: #{tpu_custom_call.1} parent=11 // pred_region
          %p168 = scmp.lt.s32.totalorder %s26, 0
          %s169 = scalar_select %p168, %s26, 0
          %s170 = scalar_lea.vmem %s2, %s169
        $region20: #{tpu_custom_call.1} parent=11 // pred_fallthru
          _
      $region12: #{tpu_custom_call.1} parent=5 // pred_fallthru
        _
      %p171 = scmp.lt.s32.totalorder %s16, 2
      // Predicated region
      $region21: #{tpu_custom_call.1} parent=5 // pred_check
        %p172 = pneg %p171
      $region22: #{tpu_custom_call.1} parent=5 // pred_check_branch
        %174 = sbr.rel (%p172) target = $region24
      $region23: #{tpu_custom_call.1} parent=5 // pred_region
        // Predicated region
        $region25: #{tpu_custom_call.1} parent=23 // pred_check
          %p175 = pneg %p48
        $region26: #{tpu_custom_call.1} parent=23 // pred_check_branch
          %177 = sbr.rel (%p175) target = $region28
        $region27: #{tpu_custom_call.1} parent=23 // pred_region
          %s178 = sand.u32 %s38, 1
          %s179 = scalar_lea.sflag [#allocation3], %s178
          %s180 = sand.u32 %s38, 1
          %s181 = smul.addr %s180, 4
          %s182 = scalar_lea.vmem [#allocation2], %s181
          %184 = vsyncadd %s179, 0
          %s185 = smul.addr %s23, 4
          %s186 = scalar_lea.hbm %s0, %s185
          %s188 = sshll.u32 %s186, 4
          %s189 = int_to_ptr.hbm [resolvable:$true] %s188
          %s190 = sshll.u32 %s182, 4
          %s191 = int_to_ptr.vmem [resolvable:$true] %s190
          %193 = dma.hbm_to_vmem [thread:$0]  %s189, 64, %s191, %s179
        $region28: #{tpu_custom_call.1} parent=23 // pred_fallthru
          _
      $region24: #{tpu_custom_call.1} parent=5 // pred_fallthru
        _
      %p194 = scmp.le.s32.totalorder 1, %s16
      %p195 = scmp.lt.s32.totalorder %s16, 3
      %p196 = pnand %p194, %p195
      %p197 = pneg %p196
      // Predicated region
      $region29: #{tpu_custom_call.1} parent=5 // pred_check
        _
      $region30: #{tpu_custom_call.1} parent=5 // pred_check_branch
        %199 = sbr.rel (%p196) target = $region32
      $region31: #{tpu_custom_call.1} parent=5 // pred_region
        %s200 = ssub.s32 %s16, 1
        %s201 = sand.u32 %s41, 1
        %s202 = scalar_lea.sflag [#allocation3], %s201
        %s203 = sand.u32 %s41, 1
        %s204 = smul.addr %s203, 4
        %s205 = scalar_lea.vmem [#allocation2], %s204
        // Predicated region
        $region33: #{tpu_custom_call.1} parent=31 // pred_check
          %p206 = pneg %p54
        $region34: #{tpu_custom_call.1} parent=31 // pred_check_branch
          %208 = sbr.rel (%p206) target = $region36
        $region35: #{tpu_custom_call.1} parent=31 // pred_region
          %210 = dma.done %s202, 64
        $region36: #{tpu_custom_call.1} parent=31 // pred_fallthru
          _
        // Predicated region
        $region37: #{tpu_custom_call.1} parent=31 // pred_check
          %p211 = pneg %p80
        $region38: #{tpu_custom_call.1} parent=31 // pred_check_branch
          %213 = sbr.rel (%p211) target = $region40
        $region39: #{tpu_custom_call.1} parent=31 // pred_region
          %215 = dma.done [#allocation6], 256
        $region40: #{tpu_custom_call.1} parent=31 // pred_fallthru
          _
        %s216 = sand.u32 %s41, 1
        %s217 = scalar_lea.sflag [#allocation3], %s216
        %s218 = sand.u32 %s41, 1
        %s219 = smul.addr %s218, 4
        %s220 = scalar_lea.vmem [#allocation2], %s219
        %p221 = pneg %p54
        %p222 = pneg %p51
        %p223 = pneg %p80
        %p224 = pneg %p77
        %p225 = scmp.lt.s32.totalorder %s26, 0
        %s226 = scalar_select %p225, %s26, 0
        %s227 = scalar_lea.vmem %s2, %s226
        %p228 = pneg %p106
        %p229 = pneg %p103
        %p230 = pneg %p134
        %p231 = pneg %p131
        %s232 = sand.u32 %s121, 1
        %s233 = scalar_lea.sflag [#allocation4], %s232
        %s234 = sand.u32 %s121, 1
        %s235 = smul.addr %s234, 32
        %s236 = scalar_lea.vmem [#allocation7], %s235
        %p237 = scmp.lt.s32.totalorder %s26, 0
        %s238 = scalar_select %p237, %s26, 0
        %s239 = scalar_lea.vmem %s2, %s238
        %s240 = smul.u32 4, %s26
        %v242 = vld [vmem:[%s205] sm:$0xf]
        %v243 = vld [vmem:[#allocation5] sm:$0xf]
        %v244 = vld [vmem:[#allocation5 + $0x4] sm:$0xf]
        %v245 = vld [vmem:[#allocation5 + $0x8] sm:$0xf]
        %v246 = vld [vmem:[#allocation5 + $0xc] sm:$0xf]
        %v247 = vld [vmem:[%s239] sm:$0x1]
        %v249 = vperm.slane %v247, 0
        %v255 = vunpack.c.l.b16 %v243
        %v256 = vunpack.c.l.b16 %v244
        %v257 = vunpack.c.l.b16 %v245
        %v258 = vunpack.c.l.b16 %v246
        %v259 = vpack.c.b16 %v256, %v255
        %v260 = vpack.c.b16 %v258, %v257
        %vm263 = vcmask 261120
        %v265 = vsel %vm263, %v242, 0
        %267 = vmatpush.bf16.msra.mxu0 0
        %268 = vmatpush.bf16.msra.mxu0 0
        %269 = vmatpush.bf16.msra.mxu0 0
        %270 = vmatpush.bf16.msra.mxu0 0
        %271 = vmatpush.bf16.msra.mxu0 0
        %272 = vmatpush.bf16.msra.mxu0 0
        %273 = vmatpush.bf16.msra.mxu0 %v260
        %274 = vmatpush.bf16.msra.mxu0 %v259
        %275 = vmatmul.bf16.gmra.mxu0 %v265
        %v276 = vpop.f32.mrf.mxu0
        %v277 = vadd.f32 %v249, %v276
        %v278 = vpop.f32.mrf.mxu0
        %279 = vdwg.mxu0
        %v280 = vmul.f32 %v277, 0.35355338
        %282 = vrot.lane.b32.xlu0 %v277, 120
        %v283 = vpop.permute.xlu0 %282
        %284 = vrot.lane.b32.xlu0 %v277, 112
        %v285 = vpop.permute.xlu0 %284
        %286 = vrot.lane.b32.xlu0 %v277, 104
        %v287 = vpop.permute.xlu0 %286
        %288 = vrot.lane.b32.xlu0 %v277, 96
        %v289 = vpop.permute.xlu0 %288
        %290 = vrot.lane.b32.xlu0 %v283, 96
        %v291 = vpop.permute.xlu0 %290
        %292 = vrot.lane.b32.xlu0 %v285, 96
        %v293 = vpop.permute.xlu0 %292
        %294 = vrot.lane.b32.xlu0 %v287, 96
        %v295 = vpop.permute.xlu0 %294
        %v300 = vrot.slane %v293, 4
        %vm301 = vcmask 1047556
        %v302 = vsel %vm301, %v300, %v289
        %v303 = vrot.slane %v289, 4
        %v304 = vsel %vm301, %v293, %v303
        %v306 = vunpack.c.l.s4 1983009808
        %v307 = vunpack.c.0.s8 %v306
        %v308 = vperm.slane %v302, %v307
        %v310 = vunpack.c.l.s4 1983009808
        %v311 = vunpack.c.0.s8 %v310
        %v312 = vperm.slane %v304, %v311
        %v313 = vrot.slane %v295, 4
        %v314 = vsel %vm301, %v313, %v291
        %v315 = vrot.slane %v291, 4
        %v316 = vsel %vm301, %v295, %v315
        %v318 = vunpack.c.l.s4 1983009808
        %v319 = vunpack.c.0.s8 %v318
        %v320 = vperm.slane %v314, %v319
        %v322 = vunpack.c.l.s4 1983009808
        %v323 = vunpack.c.0.s8 %v322
        %v324 = vperm.slane %v316, %v323
        %v325 = vrot.slane %v320, 4
        %v326 = vsel %vm301, %v325, %v308
        %v327 = vrot.slane %v308, 4
        %v328 = vsel %vm301, %v320, %v327
        %v330 = vunpack.c.l.s4 1934713408
        %v331 = vunpack.c.0.s8 %v330
        %v332 = vperm.slane %v326, %v331
        %v334 = vunpack.c.l.s4 1934713408
        %v335 = vunpack.c.0.s8 %v334
        %v336 = vperm.slane %v328, %v335
        %v337 = vrot.slane %v324, 4
        %v338 = vsel %vm301, %v337, %v312
        %v339 = vrot.slane %v312, 4
        %v340 = vsel %vm301, %v324, %v339
        %v342 = vunpack.c.l.s4 1934713408
        %v343 = vunpack.c.0.s8 %v342
        %v344 = vperm.slane %v338, %v343
        %v346 = vunpack.c.l.s4 1934713408
        %v347 = vunpack.c.0.s8 %v346
        %v348 = vperm.slane %v340, %v347
        %v349 = vrot.slane %v332, 4
        %v350 = vsel %vm301, 0.0, %v349
        %v351 = vrot.slane %v336, 4
        %v352 = vsel %vm301, 0.0, %v351
        %v353 = vrot.slane %v344, 4
        %v354 = vsel %vm301, 0.0, %v353
        %v355 = vrot.slane %v348, 4
        %v356 = vsel %vm301, 0.0, %v355
        %v357 = vsel %vm301, %v351, %v332
        %v359 = vunpack.c.l.s4 1983009808
        %v360 = vunpack.c.0.s8 %v359
        %v361 = vperm.slane %v357, %v360
        %v362 = vrot.slane %v352, 4
        %v363 = vsel %vm301, %v362, %v350
        %v365 = vunpack.c.l.s4 1983009808
        %v366 = vunpack.c.0.s8 %v365
        %v367 = vperm.slane %v363, %v366
        %v368 = vsel %vm301, %v355, %v344
        %v370 = vunpack.c.l.s4 1983009808
        %v371 = vunpack.c.0.s8 %v370
        %v372 = vperm.slane %v368, %v371
        %v373 = vrot.slane %v356, 4
        %v374 = vsel %vm301, %v373, %v354
        %v376 = vunpack.c.l.s4 1983009808
        %v377 = vunpack.c.0.s8 %v376
        %v378 = vperm.slane %v374, %v377
        %v379 = vrot.slane %v367, 4
        %v380 = vsel %vm301, %v379, %v361
        %v381 = vrot.slane %v361, 4
        %v382 = vsel %vm301, %v367, %v381
        %v384 = vunpack.c.l.s4 1934713408
        %v385 = vunpack.c.0.s8 %v384
        %v386 = vperm.slane %v380, %v385
        %v388 = vunpack.c.l.s4 1934713408
        %v389 = vunpack.c.0.s8 %v388
        %v390 = vperm.slane %v382, %v389
        %v391 = vrot.slane %v378, 4
        %v392 = vsel %vm301, %v391, %v372
        %v393 = vrot.slane %v372, 4
        %v394 = vsel %vm301, %v378, %v393
        %v396 = vunpack.c.l.s4 1934713408
        %v397 = vunpack.c.0.s8 %v396
        %v398 = vperm.slane %v392, %v397
        %v400 = vunpack.c.l.s4 1934713408
        %v401 = vunpack.c.0.s8 %v400
        %v402 = vperm.slane %v394, %v401
        %v403 = vrot.slane %v398, 4
        %v404 = vsel %vm301, %v403, %v386
        %v405 = vrot.slane %v386, 4
        %v406 = vsel %vm301, %v398, %v405
        %v407 = vrot.slane %v402, 4
        %v408 = vsel %vm301, %v407, %v390
        %v409 = vrot.slane %v390, 4
        %v410 = vsel %vm301, %v402, %v409
        %v411 = vpack.c.bf16 %v404, %v404
        %v412 = vpack.c.bf16 %v406, %v406
        %v413 = vpack.c.bf16 %v408, %v408
        %v414 = vpack.c.bf16 %v410, %v410
        %415 = vrot.lane.b32.xlu0 %v277, 64
        %v416 = vpop.permute.xlu0 %415
        %417 = vrot.lane.b32.xlu0 %v283, 64
        %v418 = vpop.permute.xlu0 %417
        %419 = vrot.lane.b32.xlu0 %v285, 64
        %v420 = vpop.permute.xlu0 %419
        %421 = vrot.lane.b32.xlu0 %v287, 64
        %v422 = vpop.permute.xlu0 %421
        %v427 = vrot.slane %v420, 4
        %v428 = vsel %vm301, %v427, %v416
        %v429 = vrot.slane %v416, 4
        %v430 = vsel %vm301, %v420, %v429
        %v432 = vunpack.c.l.s4 1983009808
        %v433 = vunpack.c.0.s8 %v432
        %v434 = vperm.slane %v428, %v433
        %v436 = vunpack.c.l.s4 1983009808
        %v437 = vunpack.c.0.s8 %v436
        %v438 = vperm.slane %v430, %v437
        %v439 = vrot.slane %v422, 4
        %v440 = vsel %vm301, %v439, %v418
        %v441 = vrot.slane %v418, 4
        %v442 = vsel %vm301, %v422, %v441
        %v444 = vunpack.c.l.s4 1983009808
        %v445 = vunpack.c.0.s8 %v444
        %v446 = vperm.slane %v440, %v445
        %v448 = vunpack.c.l.s4 1983009808
        %v449 = vunpack.c.0.s8 %v448
        %v450 = vperm.slane %v442, %v449
        %v451 = vrot.slane %v446, 4
        %v452 = vsel %vm301, %v451, %v434
        %v453 = vrot.slane %v434, 4
        %v454 = vsel %vm301, %v446, %v453
        %v456 = vunpack.c.l.s4 1934713408
        %v457 = vunpack.c.0.s8 %v456
        %v458 = vperm.slane %v452, %v457
        %v460 = vunpack.c.l.s4 1934713408
        %v461 = vunpack.c.0.s8 %v460
        %v462 = vperm.slane %v454, %v461
        %v463 = vrot.slane %v450, 4
        %v464 = vsel %vm301, %v463, %v438
        %v465 = vrot.slane %v438, 4
        %v466 = vsel %vm301, %v450, %v465
        %v468 = vunpack.c.l.s4 1934713408
        %v469 = vunpack.c.0.s8 %v468
        %v470 = vperm.slane %v464, %v469
        %v472 = vunpack.c.l.s4 1934713408
        %v473 = vunpack.c.0.s8 %v472
        %v474 = vperm.slane %v466, %v473
        %v475 = vrot.slane %v458, 4
        %v476 = vsel %vm301, 0.0, %v475
        %v477 = vrot.slane %v462, 4
        %v478 = vsel %vm301, 0.0, %v477
        %v479 = vrot.slane %v470, 4
        %v480 = vsel %vm301, 0.0, %v479
        %v481 = vrot.slane %v474, 4
        %v482 = vsel %vm301, 0.0, %v481
        %v483 = vsel %vm301, %v477, %v458
        %v485 = vunpack.c.l.s4 1983009808
        %v486 = vunpack.c.0.s8 %v485
        %v487 = vperm.slane %v483, %v486
        %v488 = vrot.slane %v478, 4
        %v489 = vsel %vm301, %v488, %v476
        %v491 = vunpack.c.l.s4 1983009808
        %v492 = vunpack.c.0.s8 %v491
        %v493 = vperm.slane %v489, %v492
        %v494 = vsel %vm301, %v481, %v470
        %v496 = vunpack.c.l.s4 1983009808
        %v497 = vunpack.c.0.s8 %v496
        %v498 = vperm.slane %v494, %v497
        %v499 = vrot.slane %v482, 4
        %v500 = vsel %vm301, %v499, %v480
        %v502 = vunpack.c.l.s4 1983009808
        %v503 = vunpack.c.0.s8 %v502
        %v504 = vperm.slane %v500, %v503
        %v505 = vrot.slane %v493, 4
        %v506 = vsel %vm301, %v505, %v487
        %v507 = vrot.slane %v487, 4
        %v508 = vsel %vm301, %v493, %v507
        %v510 = vunpack.c.l.s4 1934713408
        %v511 = vunpack.c.0.s8 %v510
        %v512 = vperm.slane %v506, %v511
        %v514 = vunpack.c.l.s4 1934713408
        %v515 = vunpack.c.0.s8 %v514
        %v516 = vperm.slane %v508, %v515
        %v517 = vrot.slane %v504, 4
        %v518 = vsel %vm301, %v517, %v498
        %v519 = vrot.slane %v498, 4
        %v520 = vsel %vm301, %v504, %v519
        %v522 = vunpack.c.l.s4 1934713408
        %v523 = vunpack.c.0.s8 %v522
        %v524 = vperm.slane %v518, %v523
        %v526 = vunpack.c.l.s4 1934713408
        %v527 = vunpack.c.0.s8 %v526
        %v528 = vperm.slane %v520, %v527
        %v529 = vrot.slane %v524, 4
        %v530 = vsel %vm301, %v529, %v512
        %v531 = vrot.slane %v512, 4
        %v532 = vsel %vm301, %v524, %v531
        %v533 = vrot.slane %v528, 4
        %v534 = vsel %vm301, %v533, %v516
        %v535 = vrot.slane %v516, 4
        %v536 = vsel %vm301, %v528, %v535
        %v537 = vpack.c.bf16 %v530, %v530
        %v538 = vpack.c.bf16 %v532, %v532
        %v539 = vpack.c.bf16 %v534, %v534
        %v540 = vpack.c.bf16 %v536, %v536
        %542 = vrot.lane.b32.xlu0 %v280, 120
        %v543 = vpop.permute.xlu0 %542
        %545 = vrot.lane.b32.xlu0 %v280, 112
        %v546 = vpop.permute.xlu0 %545
        %548 = vrot.lane.b32.xlu0 %v280, 104
        %v549 = vpop.permute.xlu0 %548
        %v551 = vrot.slane %v546, 4
        %v552 = vsel %vm301, %v551, %v280
        %v553 = vrot.slane %v280, 4
        %v554 = vsel %vm301, %v546, %v553
        %v556 = vunpack.c.l.s4 1983009808
        %v557 = vunpack.c.0.s8 %v556
        %v558 = vperm.slane %v552, %v557
        %v560 = vunpack.c.l.s4 1983009808
        %v561 = vunpack.c.0.s8 %v560
        %v562 = vperm.slane %v554, %v561
        %v563 = vrot.slane %v549, 4
        %v564 = vsel %vm301, %v563, %v543
        %v565 = vrot.slane %v543, 4
        %v566 = vsel %vm301, %v549, %v565
        %v568 = vunpack.c.l.s4 1983009808
        %v569 = vunpack.c.0.s8 %v568
        %v570 = vperm.slane %v564, %v569
        %v572 = vunpack.c.l.s4 1983009808
        %v573 = vunpack.c.0.s8 %v572
        %v574 = vperm.slane %v566, %v573
        %v575 = vrot.slane %v570, 4
        %v576 = vsel %vm301, %v575, %v558
        %v577 = vrot.slane %v558, 4
        %v578 = vsel %vm301, %v570, %v577
        %v580 = vunpack.c.l.s4 1934713408
        %v581 = vunpack.c.0.s8 %v580
        %v582 = vperm.slane %v576, %v581
        %v584 = vunpack.c.l.s4 1934713408
        %v585 = vunpack.c.0.s8 %v584
        %v586 = vperm.slane %v578, %v585
        %v587 = vrot.slane %v574, 4
        %v588 = vsel %vm301, %v587, %v562
        %v589 = vrot.slane %v562, 4
        %v590 = vsel %vm301, %v574, %v589
        %v592 = vunpack.c.l.s4 1934713408
        %v593 = vunpack.c.0.s8 %v592
        %v594 = vperm.slane %v588, %v593
        %v596 = vunpack.c.l.s4 1934713408
        %v597 = vunpack.c.0.s8 %v596
        %v598 = vperm.slane %v590, %v597
        %v599 = vrot.slane %v582, 4
        %v600 = vsel %vm301, 0.0, %v599
        %v601 = vrot.slane %v586, 4
        %v602 = vsel %vm301, 0.0, %v601
        %v603 = vrot.slane %v594, 4
        %v604 = vsel %vm301, 0.0, %v603
        %v605 = vrot.slane %v598, 4
        %v606 = vsel %vm301, 0.0, %v605
        %v607 = vsel %vm301, %v601, %v582
        %v609 = vunpack.c.l.s4 1983009808
        %v610 = vunpack.c.0.s8 %v609
        %v611 = vperm.slane %v607, %v610
        %v612 = vrot.slane %v602, 4
        %v613 = vsel %vm301, %v612, %v600
        %v615 = vunpack.c.l.s4 1983009808
        %v616 = vunpack.c.0.s8 %v615
        %v617 = vperm.slane %v613, %v616
        %v618 = vsel %vm301, %v605, %v594
        %v620 = vunpack.c.l.s4 1983009808
        %v621 = vunpack.c.0.s8 %v620
        %v622 = vperm.slane %v618, %v621
        %v623 = vrot.slane %v606, 4
        %v624 = vsel %vm301, %v623, %v604
        %v626 = vunpack.c.l.s4 1983009808
        %v627 = vunpack.c.0.s8 %v626
        %v628 = vperm.slane %v624, %v627
        %v629 = vrot.slane %v617, 4
        %v630 = vsel %vm301, %v629, %v611
        %v631 = vrot.slane %v611, 4
        %v632 = vsel %vm301, %v617, %v631
        %v634 = vunpack.c.l.s4 1934713408
        %v635 = vunpack.c.0.s8 %v634
        %v636 = vperm.slane %v630, %v635
        %v638 = vunpack.c.l.s4 1934713408
        %v639 = vunpack.c.0.s8 %v638
        %v640 = vperm.slane %v632, %v639
        %v641 = vrot.slane %v628, 4
        %v642 = vsel %vm301, %v641, %v622
        %v643 = vrot.slane %v622, 4
        %v644 = vsel %vm301, %v628, %v643
        %v646 = vunpack.c.l.s4 1934713408
        %v647 = vunpack.c.0.s8 %v646
        %v648 = vperm.slane %v642, %v647
        %v650 = vunpack.c.l.s4 1934713408
        %v651 = vunpack.c.0.s8 %v650
        %v652 = vperm.slane %v644, %v651
        %v653 = vrot.slane %v648, 4
        %v654 = vsel %vm301, %v653, %v636
        %v655 = vrot.slane %v636, 4
        %v656 = vsel %vm301, %v648, %v655
        %v657 = vrot.slane %v652, 4
        %v658 = vsel %vm301, %v657, %v640
        %v659 = vrot.slane %v640, 4
        %v660 = vsel %vm301, %v652, %v659
        %v661 = vpack.c.bf16 %v654, %v654
        %v662 = vpack.c.bf16 %v656, %v656
        %v663 = vpack.c.bf16 %v658, %v658
        %v664 = vpack.c.bf16 %v660, %v660
        %vm665 = vcmask 64512
        %v667 = vsel %vm665, %v661, 0
        %v670 = vsel %vm665, %v411, 0
        %672 = vmatpush.bf16.xpose.msra.mxu0 0
        %673 = vmatpush.bf16.xpose.msra.mxu0 0
        %674 = vmatpush.bf16.xpose.msra.mxu0 0
        %675 = vmatpush.bf16.xpose.msra.mxu0 0
        %676 = vmatpush.bf16.xpose.msra.mxu0 0
        %677 = vmatpush.bf16.xpose.msra.mxu0 0
        %678 = vmatpush.bf16.xpose.msra.mxu0 0
        %679 = vmatpush.bf16.xpose.msra.mxu0 %v670
        %680 = vmatmul.bf16.gmra.mxu0 %v667
        %v681 = vpop.f32.mrf.mxu0
        %v682 = vadd.f32 0.0, %v681
        %v683 = vpop.f32.mrf.mxu0
        %684 = vdwg.mxu0
        %v686 = vsel %vm665, %v662, 0
        %v689 = vsel %vm665, %v412, 0
        %691 = vmatpush.bf16.xpose.msra.mxu0 0
        %692 = vmatpush.bf16.xpose.msra.mxu0 0
        %693 = vmatpush.bf16.xpose.msra.mxu0 0
        %694 = vmatpush.bf16.xpose.msra.mxu0 0
        %695 = vmatpush.bf16.xpose.msra.mxu0 0
        %696 = vmatpush.bf16.xpose.msra.mxu0 0
        %697 = vmatpush.bf16.xpose.msra.mxu0 0
        %698 = vmatpush.bf16.xpose.msra.mxu0 %v689
        %699 = vmatmul.bf16.gmra.mxu0 %v686
        %v700 = vpop.f32.mrf.mxu0
        %v701 = vadd.f32 0.0, %v700
        %v702 = vpop.f32.mrf.mxu0
        %703 = vdwg.mxu0
        %v705 = vsel %vm665, %v663, 0
        %v708 = vsel %vm665, %v413, 0
        %710 = vmatpush.bf16.xpose.msra.mxu0 0
        %711 = vmatpush.bf16.xpose.msra.mxu0 0
        %712 = vmatpush.bf16.xpose.msra.mxu0 0
        %713 = vmatpush.bf16.xpose.msra.mxu0 0
        %714 = vmatpush.bf16.xpose.msra.mxu0 0
        %715 = vmatpush.bf16.xpose.msra.mxu0 0
        %716 = vmatpush.bf16.xpose.msra.mxu0 0
        %717 = vmatpush.bf16.xpose.msra.mxu0 %v708
        %718 = vmatmul.bf16.gmra.mxu0 %v705
        %v719 = vpop.f32.mrf.mxu0
        %v720 = vadd.f32 0.0, %v719
        %v721 = vpop.f32.mrf.mxu0
        %722 = vdwg.mxu0
        %v724 = vsel %vm665, %v664, 0
        %v727 = vsel %vm665, %v414, 0
        %729 = vmatpush.bf16.xpose.msra.mxu0 0
        %730 = vmatpush.bf16.xpose.msra.mxu0 0
        %731 = vmatpush.bf16.xpose.msra.mxu0 0
        %732 = vmatpush.bf16.xpose.msra.mxu0 0
        %733 = vmatpush.bf16.xpose.msra.mxu0 0
        %734 = vmatpush.bf16.xpose.msra.mxu0 0
        %735 = vmatpush.bf16.xpose.msra.mxu0 0
        %736 = vmatpush.bf16.xpose.msra.mxu0 %v727
        %737 = vmatmul.bf16.gmra.mxu0 %v724
        %v738 = vpop.f32.mrf.mxu0
        %v739 = vadd.f32 0.0, %v738
        %v740 = vpop.f32.mrf.mxu0
        %741 = vdwg.mxu0
        %v742 = vsel %vm665, %v682, -inf
        %743 = vmax.xlane.f32.xlu0 %v742
        %v744 = vpop.xlane.xlu0 %743
        %v745 = vsel %vm665, %v701, -inf
        %746 = vmax.xlane.f32.xlu0 %v745
        %v747 = vpop.xlane.xlu0 %746
        %v748 = vsel %vm665, %v720, -inf
        %749 = vmax.xlane.f32.xlu0 %v748
        %v750 = vpop.xlane.xlu0 %749
        %v751 = vsel %vm665, %v739, -inf
        %752 = vmax.xlane.f32.xlu0 %v751
        %v753 = vpop.xlane.xlu0 %752
        %v754 = vsub.f32 %v682, %v744
        %v755 = vsub.f32 %v701, %v747
        %v756 = vsub.f32 %v720, %v750
        %v757 = vsub.f32 %v739, %v753
        %v758 = vmul.f32 %v754, 1.442695
        %v759 = vpow.pop %v758
        %v760 = vmul.f32 %v755, 1.442695
        %v761 = vpow.pop %v760
        %v762 = vmul.f32 %v756, 1.442695
        %v763 = vpow.pop %v762
        %v764 = vmul.f32 %v757, 1.442695
        %v765 = vpow.pop %v764
        %v766 = vsel %vm665, %v759, 0.0
        %767 = vadd.xlane.f32.xlu0 %v766
        %v768 = vpop.xlane.xlu0 %767
        %v769 = vsel %vm665, %v761, 0.0
        %770 = vadd.xlane.f32.xlu0 %v769
        %v771 = vpop.xlane.xlu0 %770
        %v772 = vsel %vm665, %v763, 0.0
        %773 = vadd.xlane.f32.xlu0 %v772
        %v774 = vpop.xlane.xlu0 %773
        %v775 = vsel %vm665, %v765, 0.0
        %776 = vadd.xlane.f32.xlu0 %v775
        %v777 = vpop.xlane.xlu0 %776
        %v778 = vrcp.pop %v768
        %v779 = vrcp.pop %v771
        %v780 = vrcp.pop %v774
        %v781 = vrcp.pop %v777
        %v782 = vmul.f32 %v759, %v778
        %v783 = vmul.f32 %v761, %v779
        %v784 = vmul.f32 %v763, %v780
        %v785 = vmul.f32 %v765, %v781
        %v786 = vpack.c.bf16 %v782, %v782
        %v787 = vpack.c.bf16 %v783, %v783
        %v788 = vpack.c.bf16 %v784, %v784
        %v789 = vpack.c.bf16 %v785, %v785
        %v791 = vsel %vm665, %v786, 0
        %vm793 = vcmask 1043456
        %v795 = vsel %vm793, %v537, 0
        %797 = vmatpush.bf16.msra.mxu0 0
        %798 = vmatpush.bf16.msra.mxu0 0
        %799 = vmatpush.bf16.msra.mxu0 0
        %800 = vmatpush.bf16.msra.mxu0 0
        %801 = vmatpush.bf16.msra.mxu0 0
        %802 = vmatpush.bf16.msra.mxu0 0
        %803 = vmatpush.bf16.msra.mxu0 0
        %804 = vmatpush.bf16.msra.mxu0 %v795
        %805 = vmatmul.bf16.gmra.mxu0 %v791
        %v806 = vpop.f32.mrf.mxu0
        %v807 = vadd.f32 0.0, %v806
        %v808 = vpop.f32.mrf.mxu0
        %809 = vdwg.mxu0
        %v811 = vsel %vm665, %v787, 0
        %v814 = vsel %vm793, %v538, 0
        %816 = vmatpush.bf16.msra.mxu0 0
        %817 = vmatpush.bf16.msra.mxu0 0
        %818 = vmatpush.bf16.msra.mxu0 0
        %819 = vmatpush.bf16.msra.mxu0 0
        %820 = vmatpush.bf16.msra.mxu0 0
        %821 = vmatpush.bf16.msra.mxu0 0
        %822 = vmatpush.bf16.msra.mxu0 0
        %823 = vmatpush.bf16.msra.mxu0 %v814
        %824 = vmatmul.bf16.gmra.mxu0 %v811
        %v825 = vpop.f32.mrf.mxu0
        %v826 = vadd.f32 0.0, %v825
        %v827 = vpop.f32.mrf.mxu0
        %828 = vdwg.mxu0
        %v830 = vsel %vm665, %v788, 0
        %v833 = vsel %vm793, %v539, 0
        %835 = vmatpush.bf16.msra.mxu0 0
        %836 = vmatpush.bf16.msra.mxu0 0
        %837 = vmatpush.bf16.msra.mxu0 0
        %838 = vmatpush.bf16.msra.mxu0 0
        %839 = vmatpush.bf16.msra.mxu0 0
        %840 = vmatpush.bf16.msra.mxu0 0
        %841 = vmatpush.bf16.msra.mxu0 0
        %842 = vmatpush.bf16.msra.mxu0 %v833
        %843 = vmatmul.bf16.gmra.mxu0 %v830
        %v844 = vpop.f32.mrf.mxu0
        %v845 = vadd.f32 0.0, %v844
        %v846 = vpop.f32.mrf.mxu0
        %847 = vdwg.mxu0
        %v849 = vsel %vm665, %v789, 0
        %v852 = vsel %vm793, %v540, 0
        %854 = vmatpush.bf16.msra.mxu0 0
        %855 = vmatpush.bf16.msra.mxu0 0
        %856 = vmatpush.bf16.msra.mxu0 0
        %857 = vmatpush.bf16.msra.mxu0 0
        %858 = vmatpush.bf16.msra.mxu0 0
        %859 = vmatpush.bf16.msra.mxu0 0
        %860 = vmatpush.bf16.msra.mxu0 0
        %861 = vmatpush.bf16.msra.mxu0 %v852
        %862 = vmatmul.bf16.gmra.mxu0 %v849
        %v863 = vpop.f32.mrf.mxu0
        %v864 = vadd.f32 0.0, %v863
        %v865 = vpop.f32.mrf.mxu0
        %866 = vdwg.mxu0
        %867 = vst.msk [vmem:[%s236] sm:$0xff] %vm665, %v807
        %868 = vst.msk [vmem:[%s236 + $0x8] sm:$0xff] %vm665, %v826
        %869 = vst.msk [vmem:[%s236 + $0x10] sm:$0xff] %vm665, %v845
        %870 = vst.msk [vmem:[%s236 + $0x18] sm:$0xff] %vm665, %v864
        %s871 = sand.u32 %s121, 1
        %s872 = scalar_lea.sflag [#allocation4], %s871
        %s873 = sand.u32 %s121, 1
        %s874 = smul.addr %s873, 32
        %s875 = scalar_lea.vmem [#allocation7], %s874
        // Predicated region
        $region41: #{tpu_custom_call.1} parent=31 // pred_check
          %p876 = pneg %p131
        $region42: #{tpu_custom_call.1} parent=31 // pred_check_branch
          %878 = sbr.rel (%p876) target = $region44
        $region43: #{tpu_custom_call.1} parent=31 // pred_region
          %s879 = smul.u32 4, %s26
          %881 = vsyncadd %s872, 0
          %s882 = smul.addr %s25, 4
          %s883 = sadd.s32 %s879, %s882
          %s884 = smul.addr %s883, 8
          %s885 = scalar_lea.hbm %s3, %s884
          %s886 = sshll.u32 %s875, 4
          %s887 = int_to_ptr.vmem [resolvable:$true] %s886
          %s888 = sshll.u32 %s885, 4
          %s889 = int_to_ptr.hbm [resolvable:$true] %s888
          %894 = dma.vmem_to_hbm [thread:$0]  %s887, 512, %s889, %s872, 128, 128, 8
        $region44: #{tpu_custom_call.1} parent=31 // pred_fallthru
          _
      $region32: #{tpu_custom_call.1} parent=5 // pred_fallthru
        _
      %p895 = scmp.le.s32.totalorder 2, %s16
      // Predicated region
      $region45: #{tpu_custom_call.1} parent=5 // pred_check
        %p896 = pneg %p895
      $region46: #{tpu_custom_call.1} parent=5 // pred_check_branch
        %898 = sbr.rel (%p896) target = $region48
      $region47: #{tpu_custom_call.1} parent=5 // pred_region
        %s899 = ssub.s32 %s16, 2
        // Predicated region
        $region49: #{tpu_custom_call.1} parent=47 // pred_check
          %p900 = pneg %p137
        $region50: #{tpu_custom_call.1} parent=47 // pred_check_branch
          %902 = sbr.rel (%p900) target = $region52
        $region51: #{tpu_custom_call.1} parent=47 // pred_region
          %s903 = sand.u32 %s122, 1
          %s904 = scalar_lea.sflag [#allocation4], %s903
          %s905 = sand.u32 %s122, 1
          %s906 = smul.addr %s905, 32
          %s907 = scalar_lea.vmem [#allocation7], %s906
          %909 = dma.done %s904, 512
        $region52: #{tpu_custom_call.1} parent=47 // pred_fallthru
          _
      $region48: #{tpu_custom_call.1} parent=5 // pred_fallthru
        _
    $region6: #{tpu_custom_call.1} parent=1 // loop_footer
      %s20 = sadd.s32 1, %s16
    $region7: #{tpu_custom_call.1} parent=1 // loop_footer_branch
      %15 = sbr.rel target = $region3
    $region8: #{tpu_custom_call.1} parent=1 // loop_exit
      _
    %910 = vsyncpa [#allocation3], 1
    %s911 = scalar_lea.sflag [#allocation3], 1
    %912 = vsyncpa %s911, 1
    %913 = vsyncpa [#allocation6], 1
    %914 = vsyncpa [#allocation4], 1
    %s915 = scalar_lea.sflag [#allocation4], 1
    %916 = vsyncpa %s915, 1

</llo_original>
